<compile_context>
chip_gen: v7x
topology: tpu7x:2x2x1
jax: 0.10.0
libtpu: 0.0.40
codegen_flags: <defaults>
</compile_context>

<pallas_src>
import functools

import jax
import jax.numpy as jnp
from jax.experimental import pallas as pl
from jax.experimental.pallas import tpu as pltpu

GAMMA = 3.0          # compile-time constant; ==3 -> integer cube, no float pow
ALPHA = -1.0         # positive_weighting = -1 -> alpha weighting disabled (torchvision)
LANES = 128          # vreg lane width; flattened input is laid out (rows, 128)


def _cdiv(a, b):
    return (a + b - 1) // b


def _round_up(a, b):
    return _cdiv(a, b) * b


def _chip_config():
    """Return (num_partial_sums, max tile rows) for the current TPU generation."""
    try:
        kind = jax.devices()[0].device_kind.lower()
    except Exception:
        kind = ""
    if "v7" in kind or "7x" in kind:
        # 2 TCs/chip; 2 inputs x 2 buffers x 4 MiB = 16 MiB << 32 MiB scoped (64 MiB phys).
        return 2, 8192
    if "v6" in kind:
        # 1 TC; 16 MiB buffers, 32 MiB default scoped VMEM (128 MiB physical).
        return 1, 8192
    # v5e / older / unknown: conservative (8 MiB of buffers).
    return 1, 4096


def _focal_loss_kernel(x_ref, t_ref, o_ref, *,
                       tiles_per_core, num_full_tiles, base_rem, tile_elems):
    c = pl.program_id(0)     # partial-sum / core index ('parallel')
    ti = pl.program_id(1)    # reduction tile index     ('arbitrary')
    tile_idx = c * tiles_per_core + ti

    @pl.when(ti == 0)
    def _():
        o_ref[0, 0] = jnp.float32(0.0)

    x = x_ref[...].astype(jnp.float32)
    t = t_ref[...].astype(jnp.float32)

    # One shared exp(-|x|) feeds both the stable BCE term and the sigmoid.
    e = jnp.exp(-jnp.abs(x))                      # single EUP exp per element
    ce = jnp.maximum(x, 0.0) - x * t + jnp.log1p(e)

    # sigmoid(x) = where(x >= 0, 1/(1+e), e/(1+e)); approx reciprocal + 1 Newton step.
    denom = 1.0 + e
    r = pl.reciprocal(denom, approx=True)
    r = r * (2.0 - denom * r)                     # Newton refinement (VALU-only)
    p = jnp.where(x >= 0.0, r, e * r)

    # u = 1 - p_t = p + t - 2*p*t  (algebraic rewrite, fewer VALU ops)
    u = p + t - 2.0 * (p * t)
    loss = ce * (u * u * u)                       # gamma = 3 -> two VPU multiplies

    # Interior tiles: every element is valid -> plain sum (no mask cost).
    @pl.when(tile_idx < num_full_tiles)
    def _():
        o_ref[0, 0] += jnp.sum(loss)

    # Boundary / duplicated tiles (at most NUM_PARTIALS of them): mask by the
    # tile-local remainder.  rem <= 0 for fully-duplicated (clamped) tiles, so
    # those contribute exactly 0.  All quantities fit int32 regardless of total.
    @pl.when(tile_idx >= num_full_tiles)
    def _():
        delta = tile_idx - num_full_tiles
        rem = jnp.int32(base_rem) - delta * jnp.int32(tile_elems)
        rows_i = jax.lax.broadcasted_iota(jnp.int32, loss.shape, 0)
        lanes_i = jax.lax.broadcasted_iota(jnp.int32, loss.shape, 1)
        local_flat = rows_i * LANES + lanes_i
        o_ref[0, 0] += jnp.sum(jnp.where(local_flat < rem, loss, 0.0))


def focal_loss_mean(inputs, targets):
    """Sigmoid focal loss (gamma=3, alpha=-1, reduction='mean') for any-shape inputs.

    Targets may be any dtype (bf16 / int8 labels welcome); the kernel upcasts
    to f32 internally — do not cast in the caller (extra HBM round trip).
    """
    assert inputs.shape == targets.shape
    total = 1
    for d in inputs.shape:
        total *= d

    num_partials, tile_r_max = _chip_config()

    rows = _cdiv(total, LANES)
    if total % LANES == 0:
        # Fast path: free reshape, zero extra HBM traffic.
        x2 = inputs.reshape(rows, LANES)
        t2 = targets.reshape(rows, LANES)
    else:
        # Rare path: only a <128-element tail is logically needed, but jnp.pad
        # still copies the flat array once.
        # TODO(synk): stream the tail separately to avoid the copy entirely.
        pad = rows * LANES - total
        x2 = jnp.pad(inputs.reshape(-1), (0, pad)).reshape(rows, LANES)
        t2 = jnp.pad(targets.reshape(-1), (0, pad)).reshape(rows, LANES)

    tile_r = min(tile_r_max, _round_up(rows, 8))          # (8,128)-aligned block rows
    tiles_total = _cdiv(rows, tile_r)
    if tiles_total < 2 * num_partials:
        num_partials = 1                                   # keep each core double-buffered
    tiles_per_core = _cdiv(tiles_total, num_partials)

    tile_elems = tile_r * LANES
    num_full_tiles = total // tile_elems                   # tiles with no invalid element
    base_rem = total - num_full_tiles * tile_elems         # valid elems in the partial tile

    kernel = functools.partial(
        _focal_loss_kernel,
        tiles_per_core=tiles_per_core,
        num_full_tiles=num_full_tiles,
        base_rem=base_rem,
        tile_elems=tile_elems,
    )

    # Clamp block indices so duplicated grid steps (from the num_partials rounding)
    # re-read the last real tile instead of DMA-ing out of bounds; their
    # contribution is zeroed by the in-kernel mask.
    last_block = tiles_total - 1

    def idx_map(c, t):
        return (jnp.minimum(c * tiles_per_core + t, last_block), 0)

    bytes_accessed = x2.size * x2.dtype.itemsize + t2.size * t2.dtype.itemsize + num_partials * 4
    cost = pl.CostEstimate(flops=16 * total, transcendentals=2 * total,
                           bytes_accessed=bytes_accessed)

    partials = pl.pallas_call(
        kernel,
        out_shape=jax.ShapeDtypeStruct((num_partials, 1), jnp.float32),
        grid=(num_partials, tiles_per_core),
        in_specs=[
            pl.BlockSpec((tile_r, LANES), idx_map),
            pl.BlockSpec((tile_r, LANES), idx_map),
        ],
        out_specs=pl.BlockSpec((1, 1), lambda c, t: (c, 0), memory_space=pltpu.SMEM),
        compiler_params=pltpu.CompilerParams(
            dimension_semantics=("parallel", "arbitrary"),
            vmem_limit_bytes=32 * 1024 * 1024),
        cost_estimate=cost,
    )(x2, t2)

    # Tiny epilogue: combine per-core partial sums; fold 1/N into a constant multiply.
    return jnp.sum(partials) * jnp.float32(1.0 / total)


def focal_loss_ref(inputs, targets):
    x = inputs.astype(jnp.float32)
    t = targets.astype(jnp.float32)
    ce = jnp.maximum(x, 0.0) - x * t + jnp.log1p(jnp.exp(-jnp.abs(x)))
    p = jax.nn.sigmoid(x)
    p_t = p * t + (1.0 - p) * (1.0 - t)
    return jnp.mean(ce * (1.0 - p_t) ** GAMMA)


if __name__ == "__main__":
    key = jax.random.PRNGKey(0)
    k1, k2 = jax.random.split(key)
    # NCHW: batch=2, channels=4, spatial=16x16
    x = jax.random.normal(k1, (2, 4, 16, 16), dtype=jnp.float32) * 2.0
    t = (jax.random.uniform(k2, (2, 4, 16, 16)) > 0.5).astype(jnp.float32)

    out = jax.block_until_ready(focal_loss_mean(x, t))
    ref = focal_loss_ref(x, t)
    assert jnp.allclose(out, ref, rtol=1e-5, atol=1e-6), (out, ref)
    print("KERNEL_OK")
</pallas_src>

<mosaic_0001>
module attributes {stable_mosaic.version = 11 : i64} {
  func.func @_focal_loss_kernel(%arg0: i32, %arg1: i32, %arg2: memref<16x128xf32, #tpu.memory_space<vmem>>, %arg3: memref<16x128xf32, #tpu.memory_space<vmem>>, %arg4: memref<1x1xf32, #tpu.memory_space<smem>>) attributes {dimension_semantics = [#tpu.dimension_semantics<parallel>, #tpu.dimension_semantics<arbitrary>], iteration_bounds = array<i64: 1, 1>, scalar_prefetch = 0 : i64, scratch_operands = 0 : i64, tpu.core_type = #tpu.core_type<tc>, window_params = [{transform_indices = @transform_0, window_bounds = array<i64: 16, 128>}, {transform_indices = @transform_1, window_bounds = array<i64: 16, 128>}, {transform_indices = @transform_2, window_bounds = array<i64: 1, 1>}]} {
    %c1_i32 = arith.constant 1 : i32
    %0 = arith.muli %arg0, %c1_i32 : i32
    %1 = arith.addi %0, %arg1 : i32
    %c0_i32 = arith.constant 0 : i32
    %2 = arith.cmpi eq, %arg1, %c0_i32 : i32
    %3 = arith.extui %2 : i1 to i32
    %c0_i32_0 = arith.constant 0 : i32
    %4 = arith.cmpi ne, %3, %c0_i32_0 : i32
    scf.if %4 {
      %cst_13 = arith.constant 0.000000e+00 : f32
      %c0_14 = arith.constant 0 : index
      %c0_15 = arith.constant 0 : index
      %42 = memref.load %arg4[%c0_14, %c0_15] : memref<1x1xf32, #tpu.memory_space<smem>>
      memref.store %cst_13, %arg4[%c0_14, %c0_15] : memref<1x1xf32, #tpu.memory_space<smem>>
    } else {
    }
    %c0 = arith.constant 0 : index
    %c0_1 = arith.constant 0 : index
    %5 = vector.load %arg2[%c0, %c0_1] : memref<16x128xf32, #tpu.memory_space<vmem>>, vector<16x128xf32>
    %c0_2 = arith.constant 0 : index
    %c0_3 = arith.constant 0 : index
    %6 = vector.load %arg3[%c0_2, %c0_3] : memref<16x128xf32, #tpu.memory_space<vmem>>, vector<16x128xf32>
    %7 = math.absf %5 : vector<16x128xf32>
    %cst = arith.constant 0.000000e+00 : f32
    %8 = vector.broadcast %cst : f32 to vector<16x128xf32>
    %9 = arith.subf %8, %7 : vector<16x128xf32>
    %10 = math.exp %9 : vector<16x128xf32>
    %cst_4 = arith.constant 0.000000e+00 : f32
    %11 = vector.broadcast %cst_4 : f32 to vector<16x128xf32>
    %12 = arith.maximumf %5, %11 : vector<16x128xf32>
    %13 = arith.mulf %5, %6 : vector<16x128xf32>
    %14 = arith.subf %12, %13 : vector<16x128xf32>
    %15 = math.log1p %10 : vector<16x128xf32>
    %16 = arith.addf %14, %15 : vector<16x128xf32>
    %cst_5 = arith.constant 1.000000e+00 : f32
    %17 = vector.broadcast %cst_5 : f32 to vector<16x128xf32>
    %18 = arith.addf %17, %10 : vector<16x128xf32>
    %19 = tpu.reciprocal %18 {approx = true} : vector<16x128xf32> -> vector<16x128xf32>
    %20 = arith.mulf %18, %19 : vector<16x128xf32>
    %cst_6 = arith.constant 2.000000e+00 : f32
    %21 = vector.broadcast %cst_6 : f32 to vector<16x128xf32>
    %22 = arith.subf %21, %20 : vector<16x128xf32>
    %23 = arith.mulf %19, %22 : vector<16x128xf32>
    %cst_7 = arith.constant 0.000000e+00 : f32
    %24 = vector.broadcast %cst_7 : f32 to vector<16x128xf32>
    %25 = arith.cmpf oge, %5, %24 : vector<16x128xf32>
    %26 = arith.mulf %10, %23 : vector<16x128xf32>
    %27 = arith.select %25, %23, %26 : vector<16x128xi1>, vector<16x128xf32>
    %28 = arith.addf %27, %6 : vector<16x128xf32>
    %29 = arith.mulf %27, %6 : vector<16x128xf32>
    %cst_8 = arith.constant 2.000000e+00 : f32
    %30 = vector.broadcast %cst_8 : f32 to vector<16x128xf32>
    %31 = arith.mulf %30, %29 : vector<16x128xf32>
    %32 = arith.subf %28, %31 : vector<16x128xf32>
    %33 = arith.mulf %32, %32 : vector<16x128xf32>
    %34 = arith.mulf %33, %32 : vector<16x128xf32>
    %35 = arith.mulf %16, %34 : vector<16x128xf32>
    %c1_i32_9 = arith.constant 1 : i32
    %36 = arith.cmpi slt, %1, %c1_i32_9 : i32
    %37 = arith.extui %36 : i1 to i32
    %c0_i32_10 = arith.constant 0 : i32
    %38 = arith.cmpi ne, %37, %c0_i32_10 : i32
    scf.if %38 {
      %c0_13 = arith.constant 0 : index
      %c0_14 = arith.constant 0 : index
      %42 = memref.load %arg4[%c0_13, %c0_14] : memref<1x1xf32, #tpu.memory_space<smem>>
      %43 = vector.shape_cast %35 : vector<16x128xf32> to vector<1x16x128xf32>
      %cst_15 = arith.constant dense<0.000000e+00> : vector<1xf32>
      %44 = vector.multi_reduction <add>, %43, %cst_15 [1, 2] : vector<1x16x128xf32> to vector<1xf32>
      %45 = vector.shape_cast %44 : vector<1xf32> to vector<1x1x1xf32>
      %46 = vector.extract %45[0, 0, 0] : f32 from vector<1x1x1xf32>
      %47 = arith.addf %42, %46 : f32
      %c0_16 = arith.constant 0 : index
      %c0_17 = arith.constant 0 : index
      %48 = memref.load %arg4[%c0_16, %c0_17] : memref<1x1xf32, #tpu.memory_space<smem>>
      memref.store %47, %arg4[%c0_16, %c0_17] : memref<1x1xf32, #tpu.memory_space<smem>>
    } else {
    }
    %c1_i32_11 = arith.constant 1 : i32
    %39 = arith.cmpi sge, %1, %c1_i32_11 : i32
    %40 = arith.extui %39 : i1 to i32
    %c0_i32_12 = arith.constant 0 : i32
    %41 = arith.cmpi ne, %40, %c0_i32_12 : i32
    scf.if %41 {
      %c1_i32_13 = arith.constant 1 : i32
      %42 = arith.subi %1, %c1_i32_13 : i32
      %c2048_i32 = arith.constant 2048 : i32
      %43 = arith.muli %42, %c2048_i32 : i32
      %c0_i32_14 = arith.constant 0 : i32
      %44 = arith.subi %c0_i32_14, %43 : i32
      %45 = tpu.iota {dimensions = array<i32: 0>} : vector<16x128xi32>
      %46 = tpu.iota {dimensions = array<i32: 1>} : vector<16x128xi32>
      %c128_i32 = arith.constant 128 : i32
      %47 = vector.broadcast %c128_i32 : i32 to vector<16x128xi32>
      %48 = arith.muli %45, %47 : vector<16x128xi32>
      %49 = arith.addi %48, %46 : vector<16x128xi32>
      %c0_15 = arith.constant 0 : index
      %c0_16 = arith.constant 0 : index
      %50 = memref.load %arg4[%c0_15, %c0_16] : memref<1x1xf32, #tpu.memory_space<smem>>
      %51 = vector.broadcast %44 : i32 to vector<16x128xi32>
      %52 = arith.cmpi slt, %49, %51 : vector<16x128xi32>
      %cst_17 = arith.constant 0.000000e+00 : f32
      %53 = vector.broadcast %cst_17 : f32 to vector<16x128xf32>
      %54 = arith.select %52, %35, %53 : vector<16x128xi1>, vector<16x128xf32>
      %55 = vector.shape_cast %54 : vector<16x128xf32> to vector<1x16x128xf32>
      %cst_18 = arith.constant dense<0.000000e+00> : vector<1xf32>
      %56 = vector.multi_reduction <add>, %55, %cst_18 [1, 2] : vector<1x16x128xf32> to vector<1xf32>
      %57 = vector.shape_cast %56 : vector<1xf32> to vector<1x1x1xf32>
      %58 = vector.extract %57[0, 0, 0] : f32 from vector<1x1x1xf32>
      %59 = arith.addf %50, %58 : f32
      %c0_19 = arith.constant 0 : index
      %c0_20 = arith.constant 0 : index
      %60 = memref.load %arg4[%c0_19, %c0_20] : memref<1x1xf32, #tpu.memory_space<smem>>
      memref.store %59, %arg4[%c0_19, %c0_20] : memref<1x1xf32, #tpu.memory_space<smem>>
    } else {
    }
    return
  }
  func.func @transform_0(%arg0: i32, %arg1: i32) -> (i32, i32) {
    %c1_i32 = arith.constant 1 : i32
    %0 = arith.muli %arg0, %c1_i32 : i32
    %1 = arith.addi %0, %arg1 : i32
    %c0_i32 = arith.constant 0 : i32
    %2 = arith.minsi %1, %c0_i32 : i32
    %c0_i32_0 = arith.constant 0 : i32
    %c0_i32_1 = arith.constant 0 : i32
    return %2, %c0_i32_0 : i32, i32
  }
  func.func @transform_1(%arg0: i32, %arg1: i32) -> (i32, i32) {
    %c1_i32 = arith.constant 1 : i32
    %0 = arith.muli %arg0, %c1_i32 : i32
    %1 = arith.addi %0, %arg1 : i32
    %c0_i32 = arith.constant 0 : i32
    %2 = arith.minsi %1, %c0_i32 : i32
    %c0_i32_0 = arith.constant 0 : i32
    %c0_i32_1 = arith.constant 0 : i32
    return %2, %c0_i32_0 : i32, i32
  }
  func.func @transform_2(%arg0: i32, %arg1: i32) -> (i32, i32) {
    %c0_i32 = arith.constant 0 : i32
    %c0_i32_0 = arith.constant 0 : i32
    return %arg0, %c0_i32 : i32, i32
  }
}

</mosaic_0001>

<llo_original>
// kernel: tpu_custom_call.1
$region0: #{tpu_custom_call.1}
  #allocation0 [shape = 'u32[]', space=smem, size = 0x4, offset = 0x4, fixed_abs, tag = 'smem constant byte address 0x4 - core index']
  #allocation1 [shape = 'u32[144,128]{1,0:T(1,128)}', space=vmem, size = 0x12000, scoped, tag = 'internal scratch']
  %s0 = inlined_call_operand.hbm [shape: f32[16,128], index: 0, kind: input, shape index: {}]
  %s1 = inlined_call_operand.hbm [shape: f32[16,128], index: 1, kind: input, shape index: {}]
  %s2 = inlined_call_operand.hbm [shape: f32[1,1], index: 2, kind: output, shape index: {}]
  %s3 = sld [smem:[#allocation0]]
  $region38: #{tpu_custom_call.1} parent=0
    _
  %s5 = ssub.s32 1, %s3
  %s6 = scalar_select 0, %s5, %s3
  $region1: #{tpu_custom_call.1} parent=0
    #allocation2 [shape = 'u8[8192]{0}', space=vmem, size = 0x2000, scoped, tag = 'input window, operand 0, single buffered']
    #allocation3 [shape = 's32[1]{0}', space=sflag, size = 0x4, scoped, tag = 'scoped memory for tpu_custom_call.1']
    #allocation4 [shape = 's32[1]{0}', space=sflag, size = 0x4, scoped, tag = 'scoped memory for tpu_custom_call.1']
    #allocation5 [shape = 'u8[8192]{0}', space=vmem, size = 0x2000, scoped, tag = 'input window, operand 1, single buffered']
    #allocation6 [shape = 's32[1]{0}', space=sflag, size = 0x4, scoped, tag = 'scoped memory for tpu_custom_call.1']
    #allocation7 [shape = 'u8[512]{0}', space=smem, size = 0x200, scoped, tag = 'output window, operand 0, single buffered']
    %7 = vsyncpa [#allocation3], 0
    %8 = vsyncpa [#allocation6], 0
    %9 = vsyncpa [#allocation4], 0
    // Predicated region
    $region2: #{tpu_custom_call.1} parent=1 // pred_check
      _
    $region3: #{tpu_custom_call.1} parent=1 // pred_check_branch
      %11 = sbr.rel (0) target = $region5
    $region4: #{tpu_custom_call.1} parent=1 // pred_region
      %s12 = sadd.s32 0, 0
      %p13 = scmp.lt.s32.totalorder %s12, 0
      %s14 = scalar_select %p13, %s12, 0
      %s15 = smul.u32 2, %s14
      %s17 = ssub.s32 256, 256
      %18 = vsyncadd [#allocation3], %s17
      %s19 = smul.addr %s15, 128
      %s20 = scalar_lea.hbm %s0, %s19
      %s21 = sshll.u32 [#allocation2], 4
      %s22 = int_to_ptr.vmem [resolvable:$true] %s21
      %27 = dma.hbm_to_vmem [thread:$0]  %s20, 256, %s22, [#allocation3], 128, 128, 8
    $region5: #{tpu_custom_call.1} parent=1 // pred_fallthru
      _
    // Predicated region
    $region6: #{tpu_custom_call.1} parent=1 // pred_check
      _
    $region7: #{tpu_custom_call.1} parent=1 // pred_check_branch
      %29 = sbr.rel (0) target = $region9
    $region8: #{tpu_custom_call.1} parent=1 // pred_region
      %s30 = sadd.s32 0, 0
      %p31 = scmp.lt.s32.totalorder %s30, 0
      %s32 = scalar_select %p31, %s30, 0
      %s33 = smul.u32 2, %s32
      %s35 = ssub.s32 256, 256
      %36 = vsyncadd [#allocation6], %s35
      %s37 = smul.addr %s33, 128
      %s38 = scalar_lea.hbm %s1, %s37
      %s39 = sshll.u32 [#allocation5], 4
      %s40 = int_to_ptr.vmem [resolvable:$true] %s39
      %45 = dma.hbm_to_vmem [thread:$0]  %s38, 256, %s40, [#allocation6], 128, 128, 8
    $region9: #{tpu_custom_call.1} parent=1 // pred_fallthru
      _
    // Predicated region
    $region10: #{tpu_custom_call.1} parent=1 // pred_check
      _
    $region11: #{tpu_custom_call.1} parent=1 // pred_check_branch
      %47 = sbr.rel (0) target = $region13
    $region12: #{tpu_custom_call.1} parent=1 // pred_region
      %48 = dma.done [#allocation3], 256
    $region13: #{tpu_custom_call.1} parent=1 // pred_fallthru
      _
    // Predicated region
    $region14: #{tpu_custom_call.1} parent=1 // pred_check
      _
    $region15: #{tpu_custom_call.1} parent=1 // pred_check_branch
      %50 = sbr.rel (0) target = $region17
    $region16: #{tpu_custom_call.1} parent=1 // pred_region
      %51 = dma.done [#allocation6], 256
    $region17: #{tpu_custom_call.1} parent=1 // pred_fallthru
      _
    %s52 = sadd.s32 0, 0
    %p53 = scmp.lt.s32.totalorder %s52, 0
    %s54 = scalar_select %p53, %s52, 0
    %s55 = smul.u32 2, %s54
    %s56 = sadd.s32 0, 0
    %p57 = scmp.lt.s32.totalorder %s56, 0
    %s58 = scalar_select %p57, %s56, 0
    %s59 = smul.u32 2, %s58
    %s60 = sadd.s32 0, 0
    %p61 = scmp.eq.s32.totalorder 0, 0
    // Predicated region
    $region18: #{tpu_custom_call.1} parent=1 // pred_check
      %p62 = pneg %p61
    $region19: #{tpu_custom_call.1} parent=1 // pred_check_branch
      %64 = sbr.rel (%p62) target = $region21
    $region20: #{tpu_custom_call.1} parent=1 // pred_region
      %s65 = scalar_lea.smem [#allocation7], 0
      %66 = sst [smem:[%s65]] 0.0
    $region21: #{tpu_custom_call.1} parent=1 // pred_fallthru
      _
    %v67 = vld [vmem:[#allocation2] sm:$0xff]
    %v68 = vld [vmem:[#allocation2 + $0x8] sm:$0xff]
    %v69 = vld [vmem:[#allocation5] sm:$0xff]
    %v70 = vld [vmem:[#allocation5 + $0x8] sm:$0xff]
    %v71 = vand.u32 2147483647, %v67
    %v72 = vand.u32 2147483647, %v68
    %v73 = vsub.f32 0.0, %v71
    %v74 = vsub.f32 0.0, %v72
    %v75 = vmul.f32 %v73, 1.442695
    %v76 = vpow.pop %v75
    %v77 = vmul.f32 %v74, 1.442695
    %v78 = vpow.pop %v77
    %v79 = vmax.f32 %v67, 0.0
    %v80 = vmax.f32 %v68, 0.0
    %v81 = vmul.f32 %v67, %v69
    %v82 = vmul.f32 %v68, %v70
    %v83 = vsub.f32 %v79, %v81
    %v84 = vsub.f32 %v80, %v82
    %v85 = vadd.f32 %v76, 1.0
    %v86 = vlog2.pop %v85
    %v87 = vmul.f32 %v86, 0.6931472
    %v88 = vmul.f32 -0.5, %v76
    %v89 = vadd.f32 %v88, 1.0
    %v90 = vmul.f32 %v89, %v76
    %v91 = vand.u32 2147483647, %v76
    %vm92 = vcmp.lt.f32.partialorder %v91, 0.0004427343
    %v93 = vsel %vm92, %v90, %v87
    %v94 = vadd.f32 %v78, 1.0
    %v95 = vlog2.pop %v94
    %v96 = vmul.f32 %v95, 0.6931472
    %v97 = vmul.f32 -0.5, %v78
    %v98 = vadd.f32 %v97, 1.0
    %v99 = vmul.f32 %v98, %v78
    %v100 = vand.u32 2147483647, %v78
    %vm101 = vcmp.lt.f32.partialorder %v100, 0.0004427343
    %v102 = vsel %vm101, %v99, %v96
    %v103 = vadd.f32 %v83, %v93
    %v104 = vadd.f32 %v84, %v102
    %v105 = vadd.f32 %v76, 1.0
    %v106 = vadd.f32 %v78, 1.0
    %v107 = vrcp.pop %v105
    %v108 = vrcp.pop %v106
    %v109 = vmul.f32 %v105, %v107
    %v110 = vmul.f32 %v106, %v108
    %v111 = vsub.f32 2.0, %v109
    %v112 = vsub.f32 2.0, %v110
    %v113 = vmul.f32 %v107, %v111
    %v114 = vmul.f32 %v108, %v112
    %vm115 = vcmp.ge.f32.partialorder %v67, 0.0
    %vm116 = vcmp.ge.f32.partialorder %v68, 0.0
    %v117 = vmul.f32 %v76, %v113
    %v118 = vmul.f32 %v78, %v114
    %v119 = vsel %vm115, %v113, %v117
    %v120 = vsel %vm116, %v114, %v118
    %v121 = vadd.f32 %v119, %v69
    %v122 = vadd.f32 %v120, %v70
    %v123 = vmul.f32 %v119, %v69
    %v124 = vmul.f32 %v120, %v70
    %v125 = vmul.f32 %v123, 2.0
    %v126 = vmul.f32 %v124, 2.0
    %v127 = vsub.f32 %v121, %v125
    %v128 = vsub.f32 %v122, %v126
    %v129 = vmul.f32 %v127, %v127
    %v130 = vmul.f32 %v128, %v128
    %v131 = vmul.f32 %v129, %v127
    %v132 = vmul.f32 %v130, %v128
    %v133 = vmul.f32 %v103, %v131
    %v134 = vmul.f32 %v104, %v132
    %p135 = scmp.lt.s32.totalorder %s60, 1
    // Predicated region
    $region22: #{tpu_custom_call.1} parent=1 // pred_check
      %p136 = pneg %p135
    $region23: #{tpu_custom_call.1} parent=1 // pred_check_branch
      %138 = sbr.rel (%p136) target = $region25
    $region24: #{tpu_custom_call.1} parent=1 // pred_region
      %s139 = sld [smem:[#allocation7]]
      %v140 = vadd.f32 %v133, %v134
      %141 = vadd.xlane.f32.xlu0 %v140
      %v142 = vpop.xlane.xlu0 %141
      %v143 = vrot.slane %v142, 4
      %v144 = vadd.f32 %v142, %v143
      %v145 = vrot.slane %v144, 2
      %v146 = vadd.f32 %v144, %v145
      %v147 = vrot.slane %v146, 1
      %v148 = vadd.f32 %v146, %v147
      %s149 = vtos %v148
      %s150 = sadd.f32 %s139, %s149
      %s151 = scalar_lea.smem [#allocation7], 0
      %152 = sst [smem:[%s151]] %s150
    $region25: #{tpu_custom_call.1} parent=1 // pred_fallthru
      _
    %p153 = scmp.ge.s32.totalorder %s60, 1
    // Predicated region
    $region26: #{tpu_custom_call.1} parent=1 // pred_check
      %p154 = pneg %p153
    $region27: #{tpu_custom_call.1} parent=1 // pred_check_branch
      %156 = sbr.rel (%p154) target = $region29
    $region28: #{tpu_custom_call.1} parent=1 // pred_region
      %s157 = ssub.s32 %s60, 1
      %s158 = smul.u32 %s157, 2048
      %s159 = ssub.s32 0, %s158
      %v160 = vlaneseq
      %v161 = vshrl.u32 %v160, 7
      %v162 = vadd.s32 %v161, 8
      %v163 = vlaneseq
      %v164 = vand.u32 %v163, 127
      %v165 = vmul.u32 %v161, 128
      %v166 = vmul.u32 %v162, 128
      %v167 = vadd.s32 %v165, %v164
      %v168 = vadd.s32 %v166, %v164
      %s169 = sld [smem:[#allocation7]]
      %v170 = vstv %s159
      %vm171 = vcmp.lt.s32.totalorder %v167, %v170
      %vm172 = vcmp.lt.s32.totalorder %v168, %v170
      %v173 = vsel %vm171, %v133, 0.0
      %v174 = vsel %vm172, %v134, 0.0
      %v175 = vadd.f32 %v173, %v174
      %176 = vadd.xlane.f32.xlu0 %v175
      %v177 = vpop.xlane.xlu0 %176
      %v178 = vrot.slane %v177, 4
      %v179 = vadd.f32 %v177, %v178
      %v180 = vrot.slane %v179, 2
      %v181 = vadd.f32 %v179, %v180
      %v182 = vrot.slane %v181, 1
      %v183 = vadd.f32 %v181, %v182
      %s184 = vtos %v183
      %s185 = sadd.f32 %s169, %s184
      %s186 = scalar_lea.smem [#allocation7], 0
      %187 = sst [smem:[%s186]] %s185
    $region29: #{tpu_custom_call.1} parent=1 // pred_fallthru
      _
    // Predicated region
    $region30: #{tpu_custom_call.1} parent=1 // pred_check
      _
    $region31: #{tpu_custom_call.1} parent=1 // pred_check_branch
      %189 = sbr.rel (0) target = $region33
    $region32: #{tpu_custom_call.1} parent=1 // pred_region
      %s191 = ssub.s32 16, 16
      %192 = vsyncadd [#allocation4], %s191
      %195 = dma.smem_to_hbm [#allocation7], 16, %s2, [#allocation4]
    $region33: #{tpu_custom_call.1} parent=1 // pred_fallthru
      _
    // Predicated region
    $region34: #{tpu_custom_call.1} parent=1 // pred_check
      _
    $region35: #{tpu_custom_call.1} parent=1 // pred_check_branch
      %197 = sbr.rel (0) target = $region37
    $region36: #{tpu_custom_call.1} parent=1 // pred_region
      %198 = dma.done [#allocation4], 16
    $region37: #{tpu_custom_call.1} parent=1 // pred_fallthru
      _
    %199 = sfence
    %200 = vsyncpa [#allocation3], 1
    %201 = vsyncpa [#allocation6], 1
    %202 = vsyncpa [#allocation4], 1

</llo_original>
